<compile_context>
chip_gen: v5e
topology: v5e:2x2
jax: 0.10.0
libtpu: 0.0.40
codegen_flags: <defaults>
</compile_context>

<pallas_src>
import functools

import numpy as np
import jax
import jax.numpy as jnp
from jax import lax
from jax.experimental import pallas as pl
from jax.experimental.pallas import tpu as pltpu

MIN_NORM = 1e-15
EPS = 1e-7

# bf16 operands for the large MXU matmuls (f32 accumulation): ~2-4x MXU rate on
# v5e/v6e/v7x.  Softmax stats, expmap norms and Lorentz renormalizations stay
# f32.  Set to jnp.float32 to track the f32 PyTorch reference more tightly.
MXU_DTYPE = jnp.bfloat16


def _arcosh(x):
    return jnp.log(x + jnp.sqrt(jnp.maximum(x * x - 1.0, 0.0)))


def _round_up(x, m):
    return ((x + m - 1) // m) * m


def _row_tile(n, target):
    """Largest row tile <= target that divides n and is sublane-legal."""
    t = min(target, n)
    while t > 1:
        if n % t == 0 and (t % 8 == 0 or t == n):
            return t
        t -= 1
    return n  # full dim is always legal


def _vmem_limit_bytes():
    cap = 128 * 1024 * 1024
    try:
        cap = int(pltpu.get_tpu_info().vmem_capacity_bytes)
    except Exception:
        pass
    # Leave headroom for double buffers / compiler scratch:
    #   v5e/v6e (128 MiB) -> 96 MiB ; v7x (64 MiB per TC) -> 48 MiB.
    return int(cap * 3 // 4)


# -----------------------------------------------------------------------------
# Pass 1: HypLinear for all heads & K/Q/V (runs once per layer).
# -----------------------------------------------------------------------------
def hyp_linear_all_heads_kernel(e_ref, w_ref, b_ref, sg_ref, tg_ref, proj_ref, *,
                                curve):
    K = 1.0 / curve
    sqrtK = K ** 0.5

    e = e_ref[...].astype(jnp.float32)          # (tn, Din)
    w = w_ref[...]                              # (Din, C) MXU dtype, row 0 zeroed
    b = b_ref[...]                              # (1, C)   f32
    sg = sg_ref[...]                            # (Gpad, C) 0/1 space-col indicator
    tg = tg_ref[...]                            # (Gpad, C) ±1 time-col indicator

    # logmap0: u_space = sqrtK * arcosh(t0/sqrtK) * x_space / ||x_space||, u0 = 0.
    t0 = e[:, 0:1]
    sp_sq = jnp.maximum(jnp.sum(e * e, axis=-1, keepdims=True) - t0 * t0, 0.0)
    y_norm = jnp.maximum(jnp.sqrt(sp_sq), MIN_NORM)
    theta = jnp.maximum(t0 / sqrtK, 1.0 + EPS)
    scale = sqrtK * _arcosh(theta) * pl.reciprocal(y_norm, approx=True)

    # Tangent matmul for all heads & K/Q/V in one MXU pass.  Row 0 of w was
    # zeroed host-side, so the (irrelevant) time component of the tangent
    # vector never contributes — no mask / rank-1 correction needed.
    # TODO(synk): reference HypLinear adds a Mobius / parallel-transported bias;
    #             a tangent-space bias is used here (exact class not provided).
    es = (e * scale).astype(w.dtype)
    v = jnp.dot(es, w, preferred_element_type=jnp.float32) + b       # (tn, C)

    # expmap0 per (head x K/Q/V) group via indicator matmuls (lane-native).
    sp_g = lax.dot_general(v * v, sg, (((1,), (1,)), ((), ())),
                           preferred_element_type=jnp.float32)       # (tn, Gpad)
    vn = jnp.maximum(jnp.sqrt(sp_g), MIN_NORM)
    th = vn / sqrtK
    et = jnp.exp(th)                            # one EUP exp feeds sinh & cosh
    iet = pl.reciprocal(et, approx=True)
    sinh_th = 0.5 * (et - iet)
    cosh_th = 0.5 * (et + iet)
    coef_sp = sqrtK * sinh_th * pl.reciprocal(vn, approx=True)       # (tn, Gpad)
    time_g = sqrtK * cosh_th                                         # (tn, Gpad)

    # K groups carry a -1 in tg -> their time coordinate is pre-negated so the
    # attention pass computes the Minkowski dot with a plain matmul.
    proj = (v * jnp.dot(coef_sp, sg, preferred_element_type=jnp.float32)
            + jnp.dot(time_g, tg, preferred_element_type=jnp.float32))
    proj_ref[...] = proj.astype(proj_ref.dtype)


# -----------------------------------------------------------------------------
# Pass 2: flash-style hyper_softmax + Lorentz-centroid head aggregation.
# -----------------------------------------------------------------------------
def hyperformer_attn_kernel(k_ref, q_ref, v_ref, o_ref, m_scr, l_scr, acc_scr, *,
                            curve, temp, num_heads, d_pad, hyper_version):
    K = 1.0 / curve
    sqrtK = K ** 0.5
    H, D = num_heads, d_pad
    ki = pl.program_id(1)

    @pl.when(ki == 0)
    def _():
        m_scr[...] = jnp.full(m_scr.shape, -jnp.inf, m_scr.dtype)
        l_scr[...] = jnp.zeros(l_scr.shape, l_scr.dtype)
        acc_scr[...] = jnp.zeros(acc_scr.shape, acc_scr.dtype)

    inv_temp = 1.0 / temp
    for h in range(H):                                  # tiny H: unrolled
        # 128-lane-aligned static ref-view slices (no relayout copies).
        q_h = q_ref[:, h * D:(h + 1) * D]               # (tq, D)
        k_h = k_ref[:, h * D:(h + 1) * D]               # (tk, D) time col negated
        v_h = v_ref[:, h * D:(h + 1) * D]               # (tk, D)

        # Minkowski <q,k>_L directly (K's time column carries the -1 sign).
        dots = lax.dot_general(q_h, k_h, (((1,), (1,)), ((), ())),
                               preferred_element_type=jnp.float32)   # (tq, tk)
        if hyper_version == "dist":
            thd = jnp.maximum(-dots / K, 1.0 + EPS)
            logits = -(K * _arcosh(thd) ** 2) * inv_temp
        else:                                           # "dot"
            logits = (dots + K) * inv_temp

        m_prev = m_scr[h]                               # (tq, 1)
        m_new = jnp.maximum(m_prev, jnp.max(logits, axis=-1, keepdims=True))
        alpha = jnp.exp(m_prev - m_new)
        p = jnp.exp(logits - m_new)                     # (tq, tk)
        l_scr[h] = alpha * l_scr[h] + jnp.sum(p, axis=-1, keepdims=True)
        acc_scr[h] = alpha * acc_scr[h] + jnp.dot(
            p.astype(v_h.dtype), v_h, preferred_element_type=jnp.float32)
        m_scr[h] = m_new

    @pl.when(ki == pl.num_programs(1) - 1)
    def _():
        tq = q_ref.shape[0]
        cent = jnp.zeros((tq, D), jnp.float32)
        for h in range(H):
            z = acc_scr[h] / l_scr[h]                   # exact softmax normalization
            mnorm = jnp.sum(z * z, axis=-1, keepdims=True) - 2.0 * z[:, 0:1] ** 2
            z = z * (sqrtK * lax.rsqrt(jnp.maximum(jnp.abs(mnorm), MIN_NORM)))
            cent = cent + z * (1.0 / H)                 # uniform Lorentz centroid
        mn = jnp.sum(cent * cent, axis=-1, keepdims=True) - 2.0 * cent[:, 0:1] ** 2
        out = cent * (sqrtK * lax.rsqrt(jnp.maximum(jnp.abs(mn), MIN_NORM)))
        o_ref[...] = out.astype(o_ref.dtype)            # lane-dense (tq, Dpad) store


# -----------------------------------------------------------------------------
# Host-side parameter fusion
# -----------------------------------------------------------------------------
def _build_fused_params(w, b, d_pad, mxu_dtype):
    """Fuse all 3*H HypLinear weights into one (Din, 3*H*Dpad) matrix with
    layout [K-heads | Q-heads | V-heads] (each head padded to Dpad lanes) and
    build the ±1 indicator matrices for the group-wise expmap0."""
    three, H, Din, Dout = w.shape
    C = 3 * H * d_pad
    pad = d_pad - Dout

    w_pad = jnp.pad(w, ((0, 0), (0, 0), (0, 0), (0, pad)))
    w_all = jnp.transpose(w_pad, (2, 0, 1, 3)).reshape(Din, C)
    # Tangent vectors have a zero time component -> zero row 0 so the tangent
    # matmul is exact with no mask / rank-1 correction (and bf16-safe).
    w_all = w_all.at[0, :].set(0.0).astype(mxu_dtype)

    b_pad = jnp.pad(b, ((0, 0), (0, 0), (0, 0), (0, pad)))
    b_all = jnp.transpose(b_pad, (2, 0, 1, 3)).reshape(1, C).astype(jnp.float32)

    g_pad = _round_up(max(3 * H, 8), 8)
    cols = np.arange(C)
    grp = cols // d_pad                    # group = (proj, head); p-major
    is_time = (cols % d_pad) == 0
    gid = np.arange(g_pad)[:, None]
    hit = grp[None, :] == gid
    sg = (hit & ~is_time[None, :]).astype(np.float32)
    # K groups (grp < H) get a negated time coordinate -> q @ k^T is directly
    # the Minkowski inner product in the attention kernel.
    tsign = np.where((grp // H) == 0, -1.0, 1.0).astype(np.float32)
    tg = (hit & is_time[None, :]).astype(np.float32) * tsign[None, :]
    return w_all, b_all, jnp.asarray(sg), jnp.asarray(tg), g_pad, C


# -----------------------------------------------------------------------------
# Layer / model wrappers
# -----------------------------------------------------------------------------
def hyperformer_conv(e, params, curve, temp, hyper_version, *,
                     n_tile=256, q_tile=256, kv_tile=512):
    """One HyperFormerConv layer: HypLinear projection pass + attention pass."""
    w, b = params["w"], params["b"]        # (3, H, Din, Dout), (3, H, 1, Dout)
    _, H, Din, Dout = w.shape
    N = e.shape[0]
    d_pad = _round_up(max(Dout, 128), 128)
    w_all, b_all, sg, tg, g_pad, C = _build_fused_params(w, b, d_pad, MXU_DTYPE)
    vmem_limit = _vmem_limit_bytes()

    # ---- pass 1: projection, computed exactly once, tiled over node rows ----
    tn = _row_tile(N, n_tile)
    proj = pl.pallas_call(
        functools.partial(hyp_linear_all_heads_kernel, curve=curve),
        out_shape=jax.ShapeDtypeStruct((N, C), MXU_DTYPE),
        grid_spec=pltpu.PrefetchScalarGridSpec(
            num_scalar_prefetch=0,
            grid=(N // tn,),
            in_specs=[
                pl.BlockSpec((tn, Din), lambda i: (i, 0)),
                # TODO(synk): mark the constant blocks below pipeline_mode=
                #             pl.Buffered(1) to drop their redundant double buffer.
                pl.BlockSpec((Din, C), lambda i: (0, 0)),
                pl.BlockSpec((1, C), lambda i: (0, 0)),
                pl.BlockSpec((g_pad, C), lambda i: (0, 0)),
                pl.BlockSpec((g_pad, C), lambda i: (0, 0)),
            ],
            out_specs=pl.BlockSpec((tn, C), lambda i: (i, 0)),
        ),
        compiler_params=pltpu.CompilerParams(
            dimension_semantics=("parallel",),
            vmem_limit_bytes=vmem_limit,
        ),
    )(e, w_all, b_all, sg, tg)

    # ---- pass 2: flash-style hyper_softmax + hyper_agg over kv tiles --------
    tq = _row_tile(N, q_tile)
    tk = _row_tile(N, kv_tile)
    HD = H * d_pad
    out = pl.pallas_call(
        functools.partial(hyperformer_attn_kernel, curve=curve, temp=temp,
                          num_heads=H, d_pad=d_pad, hyper_version=hyper_version),
        out_shape=jax.ShapeDtypeStruct((N, d_pad), e.dtype),
        grid_spec=pltpu.PrefetchScalarGridSpec(
            num_scalar_prefetch=0,
            grid=(N // tq, N // tk),
            in_specs=[
                pl.BlockSpec((tk, HD), lambda qi, ki: (ki, 0)),   # K slab
                pl.BlockSpec((tq, HD), lambda qi, ki: (qi, 1)),   # Q slab
                pl.BlockSpec((tk, HD), lambda qi, ki: (ki, 2)),   # V slab
            ],
            out_specs=pl.BlockSpec((tq, d_pad), lambda qi, ki: (qi, 0)),
            scratch_shapes=[
                pltpu.VMEM((H, tq, 1), jnp.float32),      # running max
                pltpu.VMEM((H, tq, 1), jnp.float32),      # running denom
                pltpu.VMEM((H, tq, d_pad), jnp.float32),  # running numerator
            ],
        ),
        compiler_params=pltpu.CompilerParams(
            dimension_semantics=("parallel", "arbitrary"),
            vmem_limit_bytes=vmem_limit,
        ),
    )(proj, proj, proj)

    return out[:, :Dout]


def hyperformer_forward(e, adjs, layer_params, curve, temp, hyper_version):
    """HyperFormer.forward: stack of conv layers; returns (e, link_loss_)."""
    del adjs  # adjs[0] is passed to hyper_softmax in the reference but never used
    link_loss_ = []
    for params in layer_params:
        e = hyperformer_conv(e, params, curve, temp, hyper_version)
    return e, link_loss_


# -----------------------------------------------------------------------------
# Deterministic synthetic parameters / inputs
# -----------------------------------------------------------------------------
def init_conv_params(rng, num_heads, d_in, d_out):
    kw, kb = jax.random.split(rng)
    w = jax.random.normal(kw, (3, num_heads, d_in, d_out), jnp.float32) / jnp.sqrt(
        jnp.float32(d_in))
    b = 0.01 * jax.random.normal(kb, (3, num_heads, 1, d_out), jnp.float32)
    return {"w": w, "b": b}


if __name__ == "__main__":
    # HyperFormer config (the reference stacks convs on in_channels inputs, so
    # in_channels must equal hidden_channels).
    curve = 1.0
    temp = 0.5
    num_layers = 2
    num_heads = 2
    num_nodes = 16
    in_channels = hidden_channels = 8
    hyper_version = "dot"   # config['hyper_version'] in {'dot', 'dist'}

    root = jax.random.PRNGKey(0)
    k_e, k_fc, *k_layers = jax.random.split(root, 2 + num_layers)

    # Input node embeddings on the hyperboloid (time coord = column 0).
    sp = 0.5 * jax.random.normal(k_e, (num_nodes, in_channels), jnp.float32)
    sp = sp.at[:, 0].set(0.0)
    time = jnp.sqrt(1.0 / curve + jnp.sum(sp * sp, axis=-1, keepdims=True))
    e = jnp.concatenate([time, sp[:, 1:]], axis=-1)

    # self.fcs[0] / self.activation / dropout exist in __init__ but are unused
    # in forward; fc weights initialized only for shape fidelity.
    fc_w = jax.random.normal(k_fc, (in_channels, hidden_channels), jnp.float32)

    layer_params = [init_conv_params(k, num_heads, in_channels, hidden_channels)
                    for k in k_layers]

    adjs = [jnp.zeros((num_nodes, num_nodes), jnp.float32)]  # unused by the math

    out, link_loss = hyperformer_forward(e, adjs, layer_params, curve, temp,
                                         hyper_version)
    out = jax.block_until_ready(out)
    assert out.shape == (num_nodes, hidden_channels)
    assert bool(jnp.all(jnp.isfinite(out)))
    print("KERNEL_OK")
</pallas_src>

<mosaic_0001>
module attributes {stable_mosaic.version = 11 : i64} {
  func.func @hyp_linear_all_heads_kernel(%arg0: i32, %arg1: memref<16x8xf32, #tpu.memory_space<vmem>>, %arg2: memref<8x768xbf16, #tpu.memory_space<vmem>>, %arg3: memref<1x768xf32, #tpu.memory_space<vmem>>, %arg4: memref<8x768xf32, #tpu.memory_space<vmem>>, %arg5: memref<8x768xf32, #tpu.memory_space<vmem>>, %arg6: memref<16x768xbf16, #tpu.memory_space<vmem>>) attributes {dimension_semantics = [#tpu.dimension_semantics<parallel>], iteration_bounds = array<i64: 1>, scalar_prefetch = 0 : i64, scratch_operands = 0 : i64, tpu.core_type = #tpu.core_type<tc>, window_params = [{transform_indices = @transform_0, window_bounds = array<i64: 16, 8>}, {pipeline_mode = #tpu.pipeline_mode<synchronous>, transform_indices = @transform_1, window_bounds = array<i64: 8, 768>}, {pipeline_mode = #tpu.pipeline_mode<synchronous>, transform_indices = @transform_2, window_bounds = array<i64: 1, 768>}, {pipeline_mode = #tpu.pipeline_mode<synchronous>, transform_indices = @transform_3, window_bounds = array<i64: 8, 768>}, {pipeline_mode = #tpu.pipeline_mode<synchronous>, transform_indices = @transform_4, window_bounds = array<i64: 8, 768>}, {transform_indices = @transform_5, window_bounds = array<i64: 16, 768>}]} {
    %c0 = arith.constant 0 : index
    %c0_0 = arith.constant 0 : index
    %0 = vector.load %arg1[%c0, %c0_0] : memref<16x8xf32, #tpu.memory_space<vmem>>, vector<16x8xf32>
    %c0_1 = arith.constant 0 : index
    %c0_2 = arith.constant 0 : index
    %1 = vector.load %arg2[%c0_1, %c0_2] : memref<8x768xbf16, #tpu.memory_space<vmem>>, vector<8x768xbf16>
    %c0_3 = arith.constant 0 : index
    %c0_4 = arith.constant 0 : index
    %2 = vector.load %arg3[%c0_3, %c0_4] : memref<1x768xf32, #tpu.memory_space<vmem>>, vector<1x768xf32>
    %c0_5 = arith.constant 0 : index
    %c0_6 = arith.constant 0 : index
    %3 = vector.load %arg4[%c0_5, %c0_6] : memref<8x768xf32, #tpu.memory_space<vmem>>, vector<8x768xf32>
    %c0_7 = arith.constant 0 : index
    %c0_8 = arith.constant 0 : index
    %4 = vector.load %arg5[%c0_7, %c0_8] : memref<8x768xf32, #tpu.memory_space<vmem>>, vector<8x768xf32>
    %5 = vector.extract_strided_slice %0 {offsets = [0, 0], sizes = [16, 1], strides = [1, 1]} : vector<16x8xf32> to vector<16x1xf32>
    %6 = arith.mulf %0, %0 : vector<16x8xf32>
    %cst = arith.constant dense<0.000000e+00> : vector<16xf32>
    %7 = vector.multi_reduction <add>, %6, %cst [1] : vector<16x8xf32> to vector<16xf32>
    %8 = vector.shape_cast %7 : vector<16xf32> to vector<16x1xf32>
    %9 = arith.mulf %5, %5 : vector<16x1xf32>
    %10 = arith.subf %8, %9 : vector<16x1xf32>
    %cst_9 = arith.constant 0.000000e+00 : f32
    %11 = vector.broadcast %cst_9 : f32 to vector<16x1xf32>
    %12 = arith.maximumf %10, %11 : vector<16x1xf32>
    %13 = math.sqrt %12 : vector<16x1xf32>
    %cst_10 = arith.constant 1.000000e-15 : f32
    %14 = vector.broadcast %cst_10 : f32 to vector<16x1xf32>
    %15 = arith.maximumf %13, %14 : vector<16x1xf32>
    %cst_11 = arith.constant 1.000000e+00 : f32
    %16 = vector.broadcast %cst_11 : f32 to vector<16x1xf32>
    %17 = arith.divf %5, %16 : vector<16x1xf32>
    %cst_12 = arith.constant 1.00000012 : f32
    %18 = vector.broadcast %cst_12 : f32 to vector<16x1xf32>
    %19 = arith.maximumf %17, %18 : vector<16x1xf32>
    %20 = arith.mulf %19, %19 : vector<16x1xf32>
    %cst_13 = arith.constant 1.000000e+00 : f32
    %21 = vector.broadcast %cst_13 : f32 to vector<16x1xf32>
    %22 = arith.subf %20, %21 : vector<16x1xf32>
    %cst_14 = arith.constant 0.000000e+00 : f32
    %23 = vector.broadcast %cst_14 : f32 to vector<16x1xf32>
    %24 = arith.maximumf %22, %23 : vector<16x1xf32>
    %25 = math.sqrt %24 : vector<16x1xf32>
    %26 = arith.addf %19, %25 : vector<16x1xf32>
    %27 = math.log %26 : vector<16x1xf32>
    %cst_15 = arith.constant 1.000000e+00 : f32
    %28 = vector.broadcast %cst_15 : f32 to vector<16x1xf32>
    %29 = arith.mulf %28, %27 : vector<16x1xf32>
    %30 = tpu.reciprocal %15 {approx = true} : vector<16x1xf32> -> vector<16x1xf32>
    %31 = arith.mulf %29, %30 : vector<16x1xf32>
    %32 = vector.broadcast %31 : vector<16x1xf32> to vector<16x8xf32>
    %33 = arith.mulf %0, %32 : vector<16x8xf32>
    %34 = arith.truncf %33 : vector<16x8xf32> to vector<16x8xbf16>
    %cst_16 = arith.constant dense<0.000000e+00> : vector<16x768xf32>
    %35 = tpu.matmul %34, %1, %cst_16 {dimension_numbers = #tpu.dot_dimension_numbers<[1], [0], [0], [1], [0, 0, 1, 1], [], []>} : vector<16x8xbf16>, vector<8x768xbf16>, vector<16x768xf32> -> vector<16x768xf32>
    %36 = vector.broadcast %2 : vector<1x768xf32> to vector<16x768xf32>
    %37 = arith.addf %35, %36 : vector<16x768xf32>
    %38 = arith.mulf %37, %37 : vector<16x768xf32>
    %cst_17 = arith.constant dense<0.000000e+00> : vector<16x8xf32>
    %39 = tpu.matmul %38, %3, %cst_17 {dimension_numbers = #tpu.dot_dimension_numbers<[1], [1], [0], [0], [0, 0, 1, 0], [], []>} : vector<16x768xf32>, vector<8x768xf32>, vector<16x8xf32> -> vector<16x8xf32>
    %40 = math.sqrt %39 : vector<16x8xf32>
    %cst_18 = arith.constant 1.000000e-15 : f32
    %41 = vector.broadcast %cst_18 : f32 to vector<16x8xf32>
    %42 = arith.maximumf %40, %41 : vector<16x8xf32>
    %cst_19 = arith.constant 1.000000e+00 : f32
    %43 = vector.broadcast %cst_19 : f32 to vector<16x8xf32>
    %44 = arith.divf %42, %43 : vector<16x8xf32>
    %45 = math.exp %44 : vector<16x8xf32>
    %46 = tpu.reciprocal %45 {approx = true} : vector<16x8xf32> -> vector<16x8xf32>
    %47 = arith.subf %45, %46 : vector<16x8xf32>
    %cst_20 = arith.constant 5.000000e-01 : f32
    %48 = vector.broadcast %cst_20 : f32 to vector<16x8xf32>
    %49 = arith.mulf %48, %47 : vector<16x8xf32>
    %50 = arith.addf %45, %46 : vector<16x8xf32>
    %cst_21 = arith.constant 5.000000e-01 : f32
    %51 = vector.broadcast %cst_21 : f32 to vector<16x8xf32>
    %52 = arith.mulf %51, %50 : vector<16x8xf32>
    %cst_22 = arith.constant 1.000000e+00 : f32
    %53 = vector.broadcast %cst_22 : f32 to vector<16x8xf32>
    %54 = arith.mulf %53, %49 : vector<16x8xf32>
    %55 = tpu.reciprocal %42 {approx = true} : vector<16x8xf32> -> vector<16x8xf32>
    %56 = arith.mulf %54, %55 : vector<16x8xf32>
    %cst_23 = arith.constant 1.000000e+00 : f32
    %57 = vector.broadcast %cst_23 : f32 to vector<16x8xf32>
    %58 = arith.mulf %57, %52 : vector<16x8xf32>
    %cst_24 = arith.constant dense<0.000000e+00> : vector<16x768xf32>
    %59 = tpu.matmul %56, %3, %cst_24 {dimension_numbers = #tpu.dot_dimension_numbers<[1], [0], [0], [1], [0, 0, 1, 1], [], []>} : vector<16x8xf32>, vector<8x768xf32>, vector<16x768xf32> -> vector<16x768xf32>
    %60 = arith.mulf %37, %59 : vector<16x768xf32>
    %cst_25 = arith.constant dense<0.000000e+00> : vector<16x768xf32>
    %61 = tpu.matmul %58, %4, %cst_25 {dimension_numbers = #tpu.dot_dimension_numbers<[1], [0], [0], [1], [0, 0, 1, 1], [], []>} : vector<16x8xf32>, vector<8x768xf32>, vector<16x768xf32> -> vector<16x768xf32>
    %62 = arith.addf %60, %61 : vector<16x768xf32>
    %63 = arith.truncf %62 : vector<16x768xf32> to vector<16x768xbf16>
    %c0_26 = arith.constant 0 : index
    %c0_27 = arith.constant 0 : index
    %64 = vector.load %arg6[%c0_26, %c0_27] : memref<16x768xbf16, #tpu.memory_space<vmem>>, vector<16x768xbf16>
    tpu.vector_store %arg6[%c0_26, %c0_27], %63 {strides = array<i32>} : memref<16x768xbf16, #tpu.memory_space<vmem>>, vector<16x768xbf16>,
    return
  }
  func.func @transform_0(%arg0: i32) -> (i32, i32) {
    %c0_i32 = arith.constant 0 : i32
    %c0_i32_0 = arith.constant 0 : i32
    return %arg0, %c0_i32 : i32, i32
  }
  func.func @transform_1(%arg0: i32) -> (i32, i32) {
    %c0_i32 = arith.constant 0 : i32
    %c0_i32_0 = arith.constant 0 : i32
    %c0_i32_1 = arith.constant 0 : i32
    return %c0_i32, %c0_i32_0 : i32, i32
  }
  func.func @transform_2(%arg0: i32) -> (i32, i32) {
    %c0_i32 = arith.constant 0 : i32
    %c0_i32_0 = arith.constant 0 : i32
    %c0_i32_1 = arith.constant 0 : i32
    return %c0_i32, %c0_i32_0 : i32, i32
  }
  func.func @transform_3(%arg0: i32) -> (i32, i32) {
    %c0_i32 = arith.constant 0 : i32
    %c0_i32_0 = arith.constant 0 : i32
    %c0_i32_1 = arith.constant 0 : i32
    return %c0_i32, %c0_i32_0 : i32, i32
  }
  func.func @transform_4(%arg0: i32) -> (i32, i32) {
    %c0_i32 = arith.constant 0 : i32
    %c0_i32_0 = arith.constant 0 : i32
    %c0_i32_1 = arith.constant 0 : i32
    return %c0_i32, %c0_i32_0 : i32, i32
  }
  func.func @transform_5(%arg0: i32) -> (i32, i32) {
    %c0_i32 = arith.constant 0 : i32
    %c0_i32_0 = arith.constant 0 : i32
    return %arg0, %c0_i32 : i32, i32
  }
}

</mosaic_0001>

<llo_original>
// kernel: tpu_custom_call.1
$region0: #{tpu_custom_call.1}
  #allocation0 [shape = 'u32[]', space=smem, size = 0x4, offset = 0x4, fixed_abs, tag = 'smem constant byte address 0x4 - core index']
  #allocation1 [shape = 'u32[72,128]{1,0:T(1,128)}', space=vmem, size = 0x9000, scoped, tag = 'internal scratch']
  %s0 = inlined_call_operand.vmem [shape: f32[16,8], index: 0, kind: input, shape index: {}]
  %s1 = inlined_call_operand.vmem [shape: bf16[8,768], index: 1, kind: input, shape index: {}]
  %s2 = inlined_call_operand.hbm [shape: f32[1,768], index: 2, kind: input, shape index: {}]
  %s3 = inlined_call_operand.hbm [shape: f32[8,768], index: 3, kind: input, shape index: {}]
  %s4 = inlined_call_operand.hbm [shape: f32[8,768], index: 4, kind: input, shape index: {}]
  %s5 = inlined_call_operand.hbm [shape: bf16[16,768], index: 5, kind: output, shape index: {}]
  %s6 = sld [smem:[#allocation0]]
  $region42: #{tpu_custom_call.1} parent=0
    _
  %s8 = ssub.s32 1, %s6
  %s9 = scalar_select 0, %s8, %s6
  $region1: #{tpu_custom_call.1} parent=0
    #allocation2 [shape = 'u8[3072]{0}', space=vmem, size = 0xc00, scoped, tag = 'input window, operand 2, single buffered']
    #allocation3 [shape = 's32[1]{0}', space=sflag, size = 0x4, scoped, tag = 'scoped memory for tpu_custom_call.1']
    #allocation4 [shape = 's32[1]{0}', space=sflag, size = 0x4, scoped, tag = 'scoped memory for tpu_custom_call.1']
    #allocation5 [shape = 'u8[24576]{0}', space=vmem, size = 0x6000, scoped, tag = 'input window, operand 3, single buffered']
    #allocation6 [shape = 's32[1]{0}', space=sflag, size = 0x4, scoped, tag = 'scoped memory for tpu_custom_call.1']
    #allocation7 [shape = 'u8[24576]{0}', space=vmem, size = 0x6000, scoped, tag = 'input window, operand 4, single buffered']
    #allocation8 [shape = 'u8[24576]{0}', space=vmem, size = 0x6000, scoped, tag = 'output window, operand 0, single buffered']
    %10 = vsyncpa [#allocation3], 0
    %11 = vsyncpa [#allocation6], 0
    %12 = vsyncpa [#allocation4], 0
    // Predicated region
    $region2: #{tpu_custom_call.1} parent=1 // pred_check
      _
    $region3: #{tpu_custom_call.1} parent=1 // pred_check_branch
      %14 = sbr.rel (0) target = $region5
    $region4: #{tpu_custom_call.1} parent=1 // pred_region
      _
    $region5: #{tpu_custom_call.1} parent=1 // pred_fallthru
      _
    // Predicated region
    $region6: #{tpu_custom_call.1} parent=1 // pred_check
      _
    $region7: #{tpu_custom_call.1} parent=1 // pred_check_branch
      %16 = sbr.rel (0) target = $region9
    $region8: #{tpu_custom_call.1} parent=1 // pred_region
      _
    $region9: #{tpu_custom_call.1} parent=1 // pred_fallthru
      _
    // Predicated region
    $region10: #{tpu_custom_call.1} parent=1 // pred_check
      _
    $region11: #{tpu_custom_call.1} parent=1 // pred_check_branch
      %18 = sbr.rel (0) target = $region13
    $region12: #{tpu_custom_call.1} parent=1 // pred_region
      %20 = vsyncadd [#allocation3], 0
      %s22 = sshll.u32 %s2, 4
      %s23 = int_to_ptr.hbm [resolvable:$true] %s22
      %s24 = sshll.u32 [#allocation2], 4
      %s25 = int_to_ptr.vmem [resolvable:$true] %s24
      %27 = dma.hbm_to_vmem [thread:$0]  %s23, 96, %s25, [#allocation3]
    $region13: #{tpu_custom_call.1} parent=1 // pred_fallthru
      _
    // Predicated region
    $region14: #{tpu_custom_call.1} parent=1 // pred_check
      _
    $region15: #{tpu_custom_call.1} parent=1 // pred_check_branch
      %29 = sbr.rel (0) target = $region17
    $region16: #{tpu_custom_call.1} parent=1 // pred_region
      %31 = vsyncadd [#allocation6], 0
      %s33 = sshll.u32 %s3, 4
      %s34 = int_to_ptr.hbm [resolvable:$true] %s33
      %s35 = sshll.u32 [#allocation5], 4
      %s36 = int_to_ptr.vmem [resolvable:$true] %s35
      %38 = dma.hbm_to_vmem [thread:$0]  %s34, 768, %s36, [#allocation6]
    $region17: #{tpu_custom_call.1} parent=1 // pred_fallthru
      _
    // Predicated region
    $region18: #{tpu_custom_call.1} parent=1 // pred_check
      _
    $region19: #{tpu_custom_call.1} parent=1 // pred_check_branch
      %40 = sbr.rel (0) target = $region21
    $region20: #{tpu_custom_call.1} parent=1 // pred_region
      %42 = vsyncadd [#allocation6], 0
      %s44 = sshll.u32 %s4, 4
      %s45 = int_to_ptr.hbm [resolvable:$true] %s44
      %s46 = sshll.u32 [#allocation7], 4
      %s47 = int_to_ptr.vmem [resolvable:$true] %s46
      %49 = dma.hbm_to_vmem [thread:$0]  %s45, 768, %s47, [#allocation6]
    $region21: #{tpu_custom_call.1} parent=1 // pred_fallthru
      _
    // Predicated region
    $region22: #{tpu_custom_call.1} parent=1 // pred_check
      _
    $region23: #{tpu_custom_call.1} parent=1 // pred_check_branch
      %51 = sbr.rel (0) target = $region25
    $region24: #{tpu_custom_call.1} parent=1 // pred_region
      %53 = dma.done [#allocation3], 96
    $region25: #{tpu_custom_call.1} parent=1 // pred_fallthru
      _
    // Predicated region
    $region26: #{tpu_custom_call.1} parent=1 // pred_check
      _
    $region27: #{tpu_custom_call.1} parent=1 // pred_check_branch
      %55 = sbr.rel (0) target = $region29
    $region28: #{tpu_custom_call.1} parent=1 // pred_region
      %57 = dma.done [#allocation6], 768
    $region29: #{tpu_custom_call.1} parent=1 // pred_fallthru
      _
    // Predicated region
    $region30: #{tpu_custom_call.1} parent=1 // pred_check
      _
    $region31: #{tpu_custom_call.1} parent=1 // pred_check_branch
      %59 = sbr.rel (0) target = $region33
    $region32: #{tpu_custom_call.1} parent=1 // pred_region
      %61 = dma.done [#allocation6], 768
    $region33: #{tpu_custom_call.1} parent=1 // pred_fallthru
      _
    %v63 = vld [vmem:[%s0] sm:$0xff]
    %v64 = vld [vmem:[%s0 + $0x8] sm:$0xff]
    %v65 = vld [vmem:[%s1] sm:$0xff]
    %v66 = vld [vmem:[%s1 + $0x8] sm:$0xff]
    %v67 = vld [vmem:[%s1 + $0x10] sm:$0xff]
    %v68 = vld [vmem:[#allocation2] sm:$0x3f]
    %v69 = vld [vmem:[#allocation5] sm:$0xff]
    %v70 = vld [vmem:[#allocation5 + $0x8] sm:$0xff]
    %v71 = vld [vmem:[#allocation5 + $0x10] sm:$0xff]
    %v72 = vld [vmem:[#allocation5 + $0x18] sm:$0xff]
    %v73 = vld [vmem:[#allocation5 + $0x20] sm:$0xff]
    %v74 = vld [vmem:[#allocation5 + $0x28] sm:$0xff]
    %v75 = vld [vmem:[#allocation7] sm:$0xff]
    %v76 = vld [vmem:[#allocation7 + $0x8] sm:$0xff]
    %v77 = vld [vmem:[#allocation7 + $0x10] sm:$0xff]
    %v78 = vld [vmem:[#allocation7 + $0x18] sm:$0xff]
    %v79 = vld [vmem:[#allocation7 + $0x20] sm:$0xff]
    %v80 = vld [vmem:[#allocation7 + $0x28] sm:$0xff]
    %v81 = vmul.f32 %v63, %v63
    %v82 = vmul.f32 %v64, %v64
    %vm83 = vcmask 64512
    %v84 = vsel %vm83, %v81, 0.0
    %85 = vadd.xlane.f32.xlu0 %v84
    %v86 = vpop.xlane.xlu0 %85
    %v87 = vsel %vm83, %v82, 0.0
    %88 = vadd.xlane.f32.xlu0 %v87
    %v89 = vpop.xlane.xlu0 %88
    %v90 = vsub.f32 %v86, %v81
    %v91 = vsub.f32 %v89, %v82
    %v92 = vmax.f32 %v90, 0.0
    %v93 = vmax.f32 %v91, 0.0
    %v94 = vrsqrt.pop %v92
    %v95 = vmul.f32 %v94, %v92
    %v96 = vmul.f32 %v95, %v94
    %v97 = vmul.f32 0.5, %v96
    %v98 = vsub.f32 1.5, %v97
    %v99 = vmul.f32 %v94, %v98
    %v100 = vmul.f32 %v92, %v99
    %vm101 = vcmp.eq.f32.partialorder %v92, inf
    %v102 = vsel %vm101, %v92, %v100
    %vm103 = vcmp.eq.f32.partialorder %v92, 0.0
    %v104 = vand.u32 %v92, 2147483648
    %v105 = vsel %vm103, %v104, %v102
    %v106 = vrsqrt.pop %v93
    %v107 = vmul.f32 %v106, %v93
    %v108 = vmul.f32 %v107, %v106
    %v109 = vmul.f32 0.5, %v108
    %v110 = vsub.f32 1.5, %v109
    %v111 = vmul.f32 %v106, %v110
    %v112 = vmul.f32 %v93, %v111
    %vm113 = vcmp.eq.f32.partialorder %v93, inf
    %v114 = vsel %vm113, %v93, %v112
    %vm115 = vcmp.eq.f32.partialorder %v93, 0.0
    %v116 = vand.u32 %v93, 2147483648
    %v117 = vsel %vm115, %v116, %v114
    %v118 = vmax.f32 %v105, 1e-15
    %v119 = vmax.f32 %v117, 1e-15
    %v120 = vmax.f32 %v63, 1.0000001
    %v121 = vmax.f32 %v64, 1.0000001
    %v122 = vmul.f32 %v120, %v120
    %v123 = vmul.f32 %v121, %v121
    %v124 = vsub.f32 %v122, 1.0
    %v125 = vsub.f32 %v123, 1.0
    %v126 = vmax.f32 %v124, 0.0
    %v127 = vmax.f32 %v125, 0.0
    %v128 = vrsqrt.pop %v126
    %v129 = vmul.f32 %v128, %v126
    %v130 = vmul.f32 %v129, %v128
    %v131 = vmul.f32 0.5, %v130
    %v132 = vsub.f32 1.5, %v131
    %v133 = vmul.f32 %v128, %v132
    %v134 = vmul.f32 %v126, %v133
    %vm135 = vcmp.eq.f32.partialorder %v126, inf
    %v136 = vsel %vm135, %v126, %v134
    %vm137 = vcmp.eq.f32.partialorder %v126, 0.0
    %v138 = vand.u32 %v126, 2147483648
    %v139 = vsel %vm137, %v138, %v136
    %v140 = vrsqrt.pop %v127
    %v141 = vmul.f32 %v140, %v127
    %v142 = vmul.f32 %v141, %v140
    %v143 = vmul.f32 0.5, %v142
    %v144 = vsub.f32 1.5, %v143
    %v145 = vmul.f32 %v140, %v144
    %v146 = vmul.f32 %v127, %v145
    %vm147 = vcmp.eq.f32.partialorder %v127, inf
    %v148 = vsel %vm147, %v127, %v146
    %vm149 = vcmp.eq.f32.partialorder %v127, 0.0
    %v150 = vand.u32 %v127, 2147483648
    %v151 = vsel %vm149, %v150, %v148
    %v152 = vadd.f32 %v120, %v139
    %v153 = vadd.f32 %v121, %v151
    %v154 = vlog2.pop %v152
    %v155 = vmul.f32 %v154, 0.6931472
    %v156 = vlog2.pop %v153
    %v157 = vmul.f32 %v156, 0.6931472
    %v158 = vrcp.pop %v118
    %v159 = vrcp.pop %v119
    %v160 = vmul.f32 %v155, %v158
    %v161 = vmul.f32 %v157, %v159
    %163 = vset.pattern.permute.xlu0 0
    %164 = vperm.xlu0 %163, %v160
    %v165 = vpop.permute.xlu0 %164
    %168 = vset.pattern.permute.xlu0 0
    %169 = vperm.xlu0 %168, %v161
    %v170 = vpop.permute.xlu0 %169
    %v172 = vmul.f32 %v63, %v165
    %v173 = vmul.f32 %v64, %v170
    %v174 = vpack.c.bf16 %v173, %v172
    %v176 = vperm.slane %v68, 0
    %v177 = vperm.slane %v68, 1
    %v178 = vperm.slane %v68, 2
    %v179 = vperm.slane %v68, 3
    %v180 = vperm.slane %v68, 4
    %v181 = vperm.slane %v68, 5
    %v191 = vunpack.c.l.b16 %v65
    %v192 = vunpack.c.h.b16 %v65
    %v193 = vunpack.c.l.b16 %v66
    %v194 = vunpack.c.h.b16 %v66
    %v195 = vunpack.c.l.b16 %v67
    %v196 = vunpack.c.h.b16 %v67
    %v197 = vpack.c.b16 %v191, %v191
    %v198 = vpack.c.b16 %v192, %v192
    %v199 = vpack.c.b16 %v193, %v193
    %v200 = vpack.c.b16 %v194, %v194
    %v201 = vpack.c.b16 %v195, %v195
    %v202 = vpack.c.b16 %v196, %v196
    %v204 = vsel %vm83, %v174, 0
    %vm206 = vcmask 1043456
    %v208 = vsel %vm206, %v197, 0
    %v211 = vsel %vm206, %v198, 0
    %v214 = vsel %vm206, %v199, 0
    %v217 = vsel %vm206, %v200, 0
    %v220 = vsel %vm206, %v201, 0
    %v223 = vsel %vm206, %v202, 0
    %225 = vmatpush.bf16.msra.mxu0 0
    %226 = vmatpush.bf16.msra.mxu0 0
    %227 = vmatpush.bf16.msra.mxu0 0
    %228 = vmatpush.bf16.msra.mxu0 0
    %229 = vmatpush.bf16.msra.mxu0 0
    %230 = vmatpush.bf16.msra.mxu0 0
    %231 = vmatpush.bf16.msra.mxu0 0
    %232 = vmatpush.bf16.msra.mxu0 %v208
    %233 = vmatmul.bf16.gmra.mxu0 %v204
    %v234 = vpop.f32.mrf.mxu0
    %v235 = vadd.f32 %v176, %v234
    %v236 = vpop.f32.mrf.mxu0
    %v237 = vadd.f32 %v176, %v236
    %238 = vdwg.mxu0
    %239 = vmatpush.bf16.msra.mxu0 0
    %240 = vmatpush.bf16.msra.mxu0 0
    %241 = vmatpush.bf16.msra.mxu0 0
    %242 = vmatpush.bf16.msra.mxu0 0
    %243 = vmatpush.bf16.msra.mxu0 0
    %244 = vmatpush.bf16.msra.mxu0 0
    %245 = vmatpush.bf16.msra.mxu0 0
    %246 = vmatpush.bf16.msra.mxu0 %v211
    %247 = vmatmul.bf16.gmra.mxu0 %v204
    %v248 = vpop.f32.mrf.mxu0
    %v249 = vadd.f32 %v177, %v248
    %v250 = vpop.f32.mrf.mxu0
    %v251 = vadd.f32 %v177, %v250
    %252 = vdwg.mxu0
    %253 = vmatpush.bf16.msra.mxu0 0
    %254 = vmatpush.bf16.msra.mxu0 0
    %255 = vmatpush.bf16.msra.mxu0 0
    %256 = vmatpush.bf16.msra.mxu0 0
    %257 = vmatpush.bf16.msra.mxu0 0
    %258 = vmatpush.bf16.msra.mxu0 0
    %259 = vmatpush.bf16.msra.mxu0 0
    %260 = vmatpush.bf16.msra.mxu0 %v214
    %261 = vmatmul.bf16.gmra.mxu0 %v204
    %v262 = vpop.f32.mrf.mxu0
    %v263 = vadd.f32 %v178, %v262
    %v264 = vpop.f32.mrf.mxu0
    %v265 = vadd.f32 %v178, %v264
    %266 = vdwg.mxu0
    %267 = vmatpush.bf16.msra.mxu0 0
    %268 = vmatpush.bf16.msra.mxu0 0
    %269 = vmatpush.bf16.msra.mxu0 0
    %270 = vmatpush.bf16.msra.mxu0 0
    %271 = vmatpush.bf16.msra.mxu0 0
    %272 = vmatpush.bf16.msra.mxu0 0
    %273 = vmatpush.bf16.msra.mxu0 0
    %274 = vmatpush.bf16.msra.mxu0 %v217
    %275 = vmatmul.bf16.gmra.mxu0 %v204
    %v276 = vpop.f32.mrf.mxu0
    %v277 = vadd.f32 %v179, %v276
    %v278 = vpop.f32.mrf.mxu0
    %v279 = vadd.f32 %v179, %v278
    %280 = vdwg.mxu0
    %281 = vmatpush.bf16.msra.mxu0 0
    %282 = vmatpush.bf16.msra.mxu0 0
    %283 = vmatpush.bf16.msra.mxu0 0
    %284 = vmatpush.bf16.msra.mxu0 0
    %285 = vmatpush.bf16.msra.mxu0 0
    %286 = vmatpush.bf16.msra.mxu0 0
    %287 = vmatpush.bf16.msra.mxu0 0
    %288 = vmatpush.bf16.msra.mxu0 %v220
    %289 = vmatmul.bf16.gmra.mxu0 %v204
    %v290 = vpop.f32.mrf.mxu0
    %v291 = vadd.f32 %v180, %v290
    %v292 = vpop.f32.mrf.mxu0
    %v293 = vadd.f32 %v180, %v292
    %294 = vdwg.mxu0
    %295 = vmatpush.bf16.msra.mxu0 0
    %296 = vmatpush.bf16.msra.mxu0 0
    %297 = vmatpush.bf16.msra.mxu0 0
    %298 = vmatpush.bf16.msra.mxu0 0
    %299 = vmatpush.bf16.msra.mxu0 0
    %300 = vmatpush.bf16.msra.mxu0 0
    %301 = vmatpush.bf16.msra.mxu0 0
    %302 = vmatpush.bf16.msra.mxu0 %v223
    %303 = vmatmul.bf16.gmra.mxu0 %v204
    %v304 = vpop.f32.mrf.mxu0
    %v305 = vadd.f32 %v181, %v304
    %v306 = vpop.f32.mrf.mxu0
    %v307 = vadd.f32 %v181, %v306
    %308 = vdwg.mxu0
    %v309 = vmul.f32 %v235, %v235
    %v310 = vmul.f32 %v249, %v249
    %v311 = vmul.f32 %v263, %v263
    %v312 = vmul.f32 %v277, %v277
    %v313 = vmul.f32 %v291, %v291
    %v314 = vmul.f32 %v305, %v305
    %v315 = vmul.f32 %v237, %v237
    %v316 = vmul.f32 %v251, %v251
    %v317 = vmul.f32 %v265, %v265
    %v318 = vmul.f32 %v279, %v279
    %v319 = vmul.f32 %v293, %v293
    %v320 = vmul.f32 %v307, %v307
    %321 = vmatpush.xpose.msra.mxu0 0.0
    %322 = vmatpush.xpose.msra.mxu0 0.0
    %323 = vmatpush.xpose.msra.mxu0 0.0
    %324 = vmatpush.xpose.msra.mxu0 0.0
    %325 = vmatpush.xpose.msra.mxu0 0.0
    %326 = vmatpush.xpose.msra.mxu0 0.0
    %327 = vmatpush.xpose.msra.mxu0 0.0
    %328 = vmatpush.xpose.msra.mxu0 0.0
    %329 = vmatpush.xpose.msra.mxu0 0.0
    %330 = vmatpush.xpose.msra.mxu0 0.0
    %331 = vmatpush.xpose.msra.mxu0 0.0
    %332 = vmatpush.xpose.msra.mxu0 0.0
    %333 = vmatpush.xpose.msra.mxu0 0.0
    %334 = vmatpush.xpose.msra.mxu0 0.0
    %335 = vmatpush.xpose.msra.mxu0 0.0
    %336 = vmatpush.xpose.msra.mxu0 %v69
    %337 = vmatmul.f32.gmra.mxu0 %v309
    %v338 = vpop.f32.mrf.mxu0
    %v339 = vadd.f32 0.0, %v338
    %340 = vmatmul.f32.gmra.mxu0 %v315
    %v341 = vpop.f32.mrf.mxu0
    %v342 = vadd.f32 0.0, %v341
    %343 = vdwg.mxu0
    %344 = vmatpush.xpose.msra.mxu0 0.0
    %345 = vmatpush.xpose.msra.mxu0 0.0
    %346 = vmatpush.xpose.msra.mxu0 0.0
    %347 = vmatpush.xpose.msra.mxu0 0.0
    %348 = vmatpush.xpose.msra.mxu0 0.0
    %349 = vmatpush.xpose.msra.mxu0 0.0
    %350 = vmatpush.xpose.msra.mxu0 0.0
    %351 = vmatpush.xpose.msra.mxu0 0.0
    %352 = vmatpush.xpose.msra.mxu0 0.0
    %353 = vmatpush.xpose.msra.mxu0 0.0
    %354 = vmatpush.xpose.msra.mxu0 0.0
    %355 = vmatpush.xpose.msra.mxu0 0.0
    %356 = vmatpush.xpose.msra.mxu0 0.0
    %357 = vmatpush.xpose.msra.mxu0 0.0
    %358 = vmatpush.xpose.msra.mxu0 0.0
    %359 = vmatpush.xpose.msra.mxu0 %v70
    %360 = vmatmul.f32.gmra.mxu0 %v310
    %v361 = vpop.f32.mrf.mxu0
    %v362 = vadd.f32 %v339, %v361
    %363 = vmatmul.f32.gmra.mxu0 %v316
    %v364 = vpop.f32.mrf.mxu0
    %v365 = vadd.f32 %v342, %v364
    %366 = vdwg.mxu0
    %367 = vmatpush.xpose.msra.mxu0 0.0
    %368 = vmatpush.xpose.msra.mxu0 0.0
    %369 = vmatpush.xpose.msra.mxu0 0.0
    %370 = vmatpush.xpose.msra.mxu0 0.0
    %371 = vmatpush.xpose.msra.mxu0 0.0
    %372 = vmatpush.xpose.msra.mxu0 0.0
    %373 = vmatpush.xpose.msra.mxu0 0.0
    %374 = vmatpush.xpose.msra.mxu0 0.0
    %375 = vmatpush.xpose.msra.mxu0 0.0
    %376 = vmatpush.xpose.msra.mxu0 0.0
    %377 = vmatpush.xpose.msra.mxu0 0.0
    %378 = vmatpush.xpose.msra.mxu0 0.0
    %379 = vmatpush.xpose.msra.mxu0 0.0
    %380 = vmatpush.xpose.msra.mxu0 0.0
    %381 = vmatpush.xpose.msra.mxu0 0.0
    %382 = vmatpush.xpose.msra.mxu0 %v71
    %383 = vmatmul.f32.gmra.mxu0 %v311
    %v384 = vpop.f32.mrf.mxu0
    %v385 = vadd.f32 %v362, %v384
    %386 = vmatmul.f32.gmra.mxu0 %v317
    %v387 = vpop.f32.mrf.mxu0
    %v388 = vadd.f32 %v365, %v387
    %389 = vdwg.mxu0
    %390 = vmatpush.xpose.msra.mxu0 0.0
    %391 = vmatpush.xpose.msra.mxu0 0.0
    %392 = vmatpush.xpose.msra.mxu0 0.0
    %393 = vmatpush.xpose.msra.mxu0 0.0
    %394 = vmatpush.xpose.msra.mxu0 0.0
    %395 = vmatpush.xpose.msra.mxu0 0.0
    %396 = vmatpush.xpose.msra.mxu0 0.0
    %397 = vmatpush.xpose.msra.mxu0 0.0
    %398 = vmatpush.xpose.msra.mxu0 0.0
    %399 = vmatpush.xpose.msra.mxu0 0.0
    %400 = vmatpush.xpose.msra.mxu0 0.0
    %401 = vmatpush.xpose.msra.mxu0 0.0
    %402 = vmatpush.xpose.msra.mxu0 0.0
    %403 = vmatpush.xpose.msra.mxu0 0.0
    %404 = vmatpush.xpose.msra.mxu0 0.0
    %405 = vmatpush.xpose.msra.mxu0 %v72
    %406 = vmatmul.f32.gmra.mxu0 %v312
    %v407 = vpop.f32.mrf.mxu0
    %v408 = vadd.f32 %v385, %v407
    %409 = vmatmul.f32.gmra.mxu0 %v318
    %v410 = vpop.f32.mrf.mxu0
    %v411 = vadd.f32 %v388, %v410
    %412 = vdwg.mxu0
    %413 = vmatpush.xpose.msra.mxu0 0.0
    %414 = vmatpush.xpose.msra.mxu0 0.0
    %415 = vmatpush.xpose.msra.mxu0 0.0
    %416 = vmatpush.xpose.msra.mxu0 0.0
    %417 = vmatpush.xpose.msra.mxu0 0.0
    %418 = vmatpush.xpose.msra.mxu0 0.0
    %419 = vmatpush.xpose.msra.mxu0 0.0
    %420 = vmatpush.xpose.msra.mxu0 0.0
    %421 = vmatpush.xpose.msra.mxu0 0.0
    %422 = vmatpush.xpose.msra.mxu0 0.0
    %423 = vmatpush.xpose.msra.mxu0 0.0
    %424 = vmatpush.xpose.msra.mxu0 0.0
    %425 = vmatpush.xpose.msra.mxu0 0.0
    %426 = vmatpush.xpose.msra.mxu0 0.0
    %427 = vmatpush.xpose.msra.mxu0 0.0
    %428 = vmatpush.xpose.msra.mxu0 %v73
    %429 = vmatmul.f32.gmra.mxu0 %v313
    %v430 = vpop.f32.mrf.mxu0
    %v431 = vadd.f32 %v408, %v430
    %432 = vmatmul.f32.gmra.mxu0 %v319
    %v433 = vpop.f32.mrf.mxu0
    %v434 = vadd.f32 %v411, %v433
    %435 = vdwg.mxu0
    %436 = vmatpush.xpose.msra.mxu0 0.0
    %437 = vmatpush.xpose.msra.mxu0 0.0
    %438 = vmatpush.xpose.msra.mxu0 0.0
    %439 = vmatpush.xpose.msra.mxu0 0.0
    %440 = vmatpush.xpose.msra.mxu0 0.0
    %441 = vmatpush.xpose.msra.mxu0 0.0
    %442 = vmatpush.xpose.msra.mxu0 0.0
    %443 = vmatpush.xpose.msra.mxu0 0.0
    %444 = vmatpush.xpose.msra.mxu0 0.0
    %445 = vmatpush.xpose.msra.mxu0 0.0
    %446 = vmatpush.xpose.msra.mxu0 0.0
    %447 = vmatpush.xpose.msra.mxu0 0.0
    %448 = vmatpush.xpose.msra.mxu0 0.0
    %449 = vmatpush.xpose.msra.mxu0 0.0
    %450 = vmatpush.xpose.msra.mxu0 0.0
    %451 = vmatpush.xpose.msra.mxu0 %v74
    %452 = vmatmul.f32.gmra.mxu0 %v314
    %v453 = vpop.f32.mrf.mxu0
    %v454 = vadd.f32 %v431, %v453
    %455 = vmatmul.f32.gmra.mxu0 %v320
    %v456 = vpop.f32.mrf.mxu0
    %v457 = vadd.f32 %v434, %v456
    %458 = vdwg.mxu0
    %v459 = vrsqrt.pop %v454
    %v460 = vmul.f32 %v459, %v454
    %v461 = vmul.f32 %v460, %v459
    %v462 = vmul.f32 0.5, %v461
    %v463 = vsub.f32 1.5, %v462
    %v464 = vmul.f32 %v459, %v463
    %v465 = vmul.f32 %v454, %v464
    %vm466 = vcmp.eq.f32.partialorder %v454, inf
    %v467 = vsel %vm466, %v454, %v465
    %vm468 = vcmp.eq.f32.partialorder %v454, 0.0
    %v469 = vand.u32 %v454, 2147483648
    %v470 = vsel %vm468, %v469, %v467
    %v471 = vrsqrt.pop %v457
    %v472 = vmul.f32 %v471, %v457
    %v473 = vmul.f32 %v472, %v471
    %v474 = vmul.f32 0.5, %v473
    %v475 = vsub.f32 1.5, %v474
    %v476 = vmul.f32 %v471, %v475
    %v477 = vmul.f32 %v457, %v476
    %vm478 = vcmp.eq.f32.partialorder %v457, inf
    %v479 = vsel %vm478, %v457, %v477
    %vm480 = vcmp.eq.f32.partialorder %v457, 0.0
    %v481 = vand.u32 %v457, 2147483648
    %v482 = vsel %vm480, %v481, %v479
    %v483 = vmax.f32 %v470, 1e-15
    %v484 = vmax.f32 %v482, 1e-15
    %v485 = vmul.f32 %v483, 1.442695
    %v486 = vpow.pop %v485
    %v487 = vmul.f32 %v484, 1.442695
    %v488 = vpow.pop %v487
    %v489 = vrcp.pop %v486
    %v490 = vrcp.pop %v488
    %v491 = vsub.f32 %v486, %v489
    %v492 = vsub.f32 %v488, %v490
    %v493 = vmul.f32 %v491, 0.5
    %v494 = vmul.f32 %v492, 0.5
    %v495 = vadd.f32 %v486, %v489
    %v496 = vadd.f32 %v488, %v490
    %v497 = vmul.f32 %v495, 0.5
    %v498 = vmul.f32 %v496, 0.5
    %v499 = vrcp.pop %v483
    %v500 = vrcp.pop %v484
    %v501 = vmul.f32 %v493, %v499
    %v502 = vmul.f32 %v494, %v500
    %v504 = vsel %vm83, %v501, 0
    %v507 = vsel %vm83, %v502, 0
    %509 = vmatpush.msra.mxu0 0.0
    %510 = vmatpush.msra.mxu0 0.0
    %511 = vmatpush.msra.mxu0 0.0
    %512 = vmatpush.msra.mxu0 0.0
    %513 = vmatpush.msra.mxu0 0.0
    %514 = vmatpush.msra.mxu0 0.0
    %515 = vmatpush.msra.mxu0 0.0
    %516 = vmatpush.msra.mxu0 0.0
    %517 = vmatpush.msra.mxu0 0.0
    %518 = vmatpush.msra.mxu0 0.0
    %519 = vmatpush.msra.mxu0 0.0
    %520 = vmatpush.msra.mxu0 0.0
    %521 = vmatpush.msra.mxu0 0.0
    %522 = vmatpush.msra.mxu0 0.0
    %523 = vmatpush.msra.mxu0 0.0
    %524 = vmatpush.msra.mxu0 %v69
    %525 = vmatmul.f32.gmra.mxu0 %v504
    %v526 = vpop.f32.mrf.mxu0
    %v527 = vadd.f32 0.0, %v526
    %528 = vmatmul.f32.gmra.mxu0 %v507
    %v529 = vpop.f32.mrf.mxu0
    %v530 = vadd.f32 0.0, %v529
    %531 = vdwg.mxu0
    %532 = vmatpush.msra.mxu0 0.0
    %533 = vmatpush.msra.mxu0 0.0
    %534 = vmatpush.msra.mxu0 0.0
    %535 = vmatpush.msra.mxu0 0.0
    %536 = vmatpush.msra.mxu0 0.0
    %537 = vmatpush.msra.mxu0 0.0
    %538 = vmatpush.msra.mxu0 0.0
    %539 = vmatpush.msra.mxu0 0.0
    %540 = vmatpush.msra.mxu0 0.0
    %541 = vmatpush.msra.mxu0 0.0
    %542 = vmatpush.msra.mxu0 0.0
    %543 = vmatpush.msra.mxu0 0.0
    %544 = vmatpush.msra.mxu0 0.0
    %545 = vmatpush.msra.mxu0 0.0
    %546 = vmatpush.msra.mxu0 0.0
    %547 = vmatpush.msra.mxu0 %v70
    %548 = vmatmul.f32.gmra.mxu0 %v504
    %v549 = vpop.f32.mrf.mxu0
    %v550 = vadd.f32 0.0, %v549
    %551 = vmatmul.f32.gmra.mxu0 %v507
    %v552 = vpop.f32.mrf.mxu0
    %v553 = vadd.f32 0.0, %v552
    %554 = vdwg.mxu0
    %555 = vmatpush.msra.mxu0 0.0
    %556 = vmatpush.msra.mxu0 0.0
    %557 = vmatpush.msra.mxu0 0.0
    %558 = vmatpush.msra.mxu0 0.0
    %559 = vmatpush.msra.mxu0 0.0
    %560 = vmatpush.msra.mxu0 0.0
    %561 = vmatpush.msra.mxu0 0.0
    %562 = vmatpush.msra.mxu0 0.0
    %563 = vmatpush.msra.mxu0 0.0
    %564 = vmatpush.msra.mxu0 0.0
    %565 = vmatpush.msra.mxu0 0.0
    %566 = vmatpush.msra.mxu0 0.0
    %567 = vmatpush.msra.mxu0 0.0
    %568 = vmatpush.msra.mxu0 0.0
    %569 = vmatpush.msra.mxu0 0.0
    %570 = vmatpush.msra.mxu0 %v71
    %571 = vmatmul.f32.gmra.mxu0 %v504
    %v572 = vpop.f32.mrf.mxu0
    %v573 = vadd.f32 0.0, %v572
    %574 = vmatmul.f32.gmra.mxu0 %v507
    %v575 = vpop.f32.mrf.mxu0
    %v576 = vadd.f32 0.0, %v575
    %577 = vdwg.mxu0
    %578 = vmatpush.msra.mxu0 0.0
    %579 = vmatpush.msra.mxu0 0.0
    %580 = vmatpush.msra.mxu0 0.0
    %581 = vmatpush.msra.mxu0 0.0
    %582 = vmatpush.msra.mxu0 0.0
    %583 = vmatpush.msra.mxu0 0.0
    %584 = vmatpush.msra.mxu0 0.0
    %585 = vmatpush.msra.mxu0 0.0
    %586 = vmatpush.msra.mxu0 0.0
    %587 = vmatpush.msra.mxu0 0.0
    %588 = vmatpush.msra.mxu0 0.0
    %589 = vmatpush.msra.mxu0 0.0
    %590 = vmatpush.msra.mxu0 0.0
    %591 = vmatpush.msra.mxu0 0.0
    %592 = vmatpush.msra.mxu0 0.0
    %593 = vmatpush.msra.mxu0 %v72
    %594 = vmatmul.f32.gmra.mxu0 %v504
    %v595 = vpop.f32.mrf.mxu0
    %v596 = vadd.f32 0.0, %v595
    %597 = vmatmul.f32.gmra.mxu0 %v507
    %v598 = vpop.f32.mrf.mxu0
    %v599 = vadd.f32 0.0, %v598
    %600 = vdwg.mxu0
    %601 = vmatpush.msra.mxu0 0.0
    %602 = vmatpush.msra.mxu0 0.0
    %603 = vmatpush.msra.mxu0 0.0
    %604 = vmatpush.msra.mxu0 0.0
    %605 = vmatpush.msra.mxu0 0.0
    %606 = vmatpush.msra.mxu0 0.0
    %607 = vmatpush.msra.mxu0 0.0
    %608 = vmatpush.msra.mxu0 0.0
    %609 = vmatpush.msra.mxu0 0.0
    %610 = vmatpush.msra.mxu0 0.0
    %611 = vmatpush.msra.mxu0 0.0
    %612 = vmatpush.msra.mxu0 0.0
    %613 = vmatpush.msra.mxu0 0.0
    %614 = vmatpush.msra.mxu0 0.0
    %615 = vmatpush.msra.mxu0 0.0
    %616 = vmatpush.msra.mxu0 %v73
    %617 = vmatmul.f32.gmra.mxu0 %v504
    %v618 = vpop.f32.mrf.mxu0
    %v619 = vadd.f32 0.0, %v618
    %620 = vmatmul.f32.gmra.mxu0 %v507
    %v621 = vpop.f32.mrf.mxu0
    %v622 = vadd.f32 0.0, %v621
    %623 = vdwg.mxu0
    %624 = vmatpush.msra.mxu0 0.0
    %625 = vmatpush.msra.mxu0 0.0
    %626 = vmatpush.msra.mxu0 0.0
    %627 = vmatpush.msra.mxu0 0.0
    %628 = vmatpush.msra.mxu0 0.0
    %629 = vmatpush.msra.mxu0 0.0
    %630 = vmatpush.msra.mxu0 0.0
    %631 = vmatpush.msra.mxu0 0.0
    %632 = vmatpush.msra.mxu0 0.0
    %633 = vmatpush.msra.mxu0 0.0
    %634 = vmatpush.msra.mxu0 0.0
    %635 = vmatpush.msra.mxu0 0.0
    %636 = vmatpush.msra.mxu0 0.0
    %637 = vmatpush.msra.mxu0 0.0
    %638 = vmatpush.msra.mxu0 0.0
    %639 = vmatpush.msra.mxu0 %v74
    %640 = vmatmul.f32.gmra.mxu0 %v504
    %v641 = vpop.f32.mrf.mxu0
    %v642 = vadd.f32 0.0, %v641
    %643 = vmatmul.f32.gmra.mxu0 %v507
    %v644 = vpop.f32.mrf.mxu0
    %v645 = vadd.f32 0.0, %v644
    %646 = vdwg.mxu0
    %v647 = vmul.f32 %v235, %v527
    %v648 = vmul.f32 %v249, %v550
    %v649 = vmul.f32 %v263, %v573
    %v650 = vmul.f32 %v277, %v596
    %v651 = vmul.f32 %v291, %v619
    %v652 = vmul.f32 %v305, %v642
    %v653 = vmul.f32 %v237, %v530
    %v654 = vmul.f32 %v251, %v553
    %v655 = vmul.f32 %v265, %v576
    %v656 = vmul.f32 %v279, %v599
    %v657 = vmul.f32 %v293, %v622
    %v658 = vmul.f32 %v307, %v645
    %v660 = vsel %vm83, %v497, 0
    %v663 = vsel %vm83, %v498, 0
    %665 = vmatpush.msra.mxu0 0.0
    %666 = vmatpush.msra.mxu0 0.0
    %667 = vmatpush.msra.mxu0 0.0
    %668 = vmatpush.msra.mxu0 0.0
    %669 = vmatpush.msra.mxu0 0.0
    %670 = vmatpush.msra.mxu0 0.0
    %671 = vmatpush.msra.mxu0 0.0
    %672 = vmatpush.msra.mxu0 0.0
    %673 = vmatpush.msra.mxu0 0.0
    %674 = vmatpush.msra.mxu0 0.0
    %675 = vmatpush.msra.mxu0 0.0
    %676 = vmatpush.msra.mxu0 0.0
    %677 = vmatpush.msra.mxu0 0.0
    %678 = vmatpush.msra.mxu0 0.0
    %679 = vmatpush.msra.mxu0 0.0
    %680 = vmatpush.msra.mxu0 %v75
    %681 = vmatmul.f32.gmra.mxu0 %v660
    %v682 = vpop.f32.mrf.mxu0
    %v683 = vadd.f32 0.0, %v682
    %684 = vmatmul.f32.gmra.mxu0 %v663
    %v685 = vpop.f32.mrf.mxu0
    %v686 = vadd.f32 0.0, %v685
    %687 = vdwg.mxu0
    %688 = vmatpush.msra.mxu0 0.0
    %689 = vmatpush.msra.mxu0 0.0
    %690 = vmatpush.msra.mxu0 0.0
    %691 = vmatpush.msra.mxu0 0.0
    %692 = vmatpush.msra.mxu0 0.0
    %693 = vmatpush.msra.mxu0 0.0
    %694 = vmatpush.msra.mxu0 0.0
    %695 = vmatpush.msra.mxu0 0.0
    %696 = vmatpush.msra.mxu0 0.0
    %697 = vmatpush.msra.mxu0 0.0
    %698 = vmatpush.msra.mxu0 0.0
    %699 = vmatpush.msra.mxu0 0.0
    %700 = vmatpush.msra.mxu0 0.0
    %701 = vmatpush.msra.mxu0 0.0
    %702 = vmatpush.msra.mxu0 0.0
    %703 = vmatpush.msra.mxu0 %v76
    %704 = vmatmul.f32.gmra.mxu0 %v660
    %v705 = vpop.f32.mrf.mxu0
    %v706 = vadd.f32 0.0, %v705
    %707 = vmatmul.f32.gmra.mxu0 %v663
    %v708 = vpop.f32.mrf.mxu0
    %v709 = vadd.f32 0.0, %v708
    %710 = vdwg.mxu0
    %711 = vmatpush.msra.mxu0 0.0
    %712 = vmatpush.msra.mxu0 0.0
    %713 = vmatpush.msra.mxu0 0.0
    %714 = vmatpush.msra.mxu0 0.0
    %715 = vmatpush.msra.mxu0 0.0
    %716 = vmatpush.msra.mxu0 0.0
    %717 = vmatpush.msra.mxu0 0.0
    %718 = vmatpush.msra.mxu0 0.0
    %719 = vmatpush.msra.mxu0 0.0
    %720 = vmatpush.msra.mxu0 0.0
    %721 = vmatpush.msra.mxu0 0.0
    %722 = vmatpush.msra.mxu0 0.0
    %723 = vmatpush.msra.mxu0 0.0
    %724 = vmatpush.msra.mxu0 0.0
    %725 = vmatpush.msra.mxu0 0.0
    %726 = vmatpush.msra.mxu0 %v77
    %727 = vmatmul.f32.gmra.mxu0 %v660
    %v728 = vpop.f32.mrf.mxu0
    %v729 = vadd.f32 0.0, %v728
    %730 = vmatmul.f32.gmra.mxu0 %v663
    %v731 = vpop.f32.mrf.mxu0
    %v732 = vadd.f32 0.0, %v731
    %733 = vdwg.mxu0
    %734 = vmatpush.msra.mxu0 0.0
    %735 = vmatpush.msra.mxu0 0.0
    %736 = vmatpush.msra.mxu0 0.0
    %737 = vmatpush.msra.mxu0 0.0
    %738 = vmatpush.msra.mxu0 0.0
    %739 = vmatpush.msra.mxu0 0.0
    %740 = vmatpush.msra.mxu0 0.0
    %741 = vmatpush.msra.mxu0 0.0
    %742 = vmatpush.msra.mxu0 0.0
    %743 = vmatpush.msra.mxu0 0.0
    %744 = vmatpush.msra.mxu0 0.0
    %745 = vmatpush.msra.mxu0 0.0
    %746 = vmatpush.msra.mxu0 0.0
    %747 = vmatpush.msra.mxu0 0.0
    %748 = vmatpush.msra.mxu0 0.0
    %749 = vmatpush.msra.mxu0 %v78
    %750 = vmatmul.f32.gmra.mxu0 %v660
    %v751 = vpop.f32.mrf.mxu0
    %v752 = vadd.f32 0.0, %v751
    %753 = vmatmul.f32.gmra.mxu0 %v663
    %v754 = vpop.f32.mrf.mxu0
    %v755 = vadd.f32 0.0, %v754
    %756 = vdwg.mxu0
    %757 = vmatpush.msra.mxu0 0.0
    %758 = vmatpush.msra.mxu0 0.0
    %759 = vmatpush.msra.mxu0 0.0
    %760 = vmatpush.msra.mxu0 0.0
    %761 = vmatpush.msra.mxu0 0.0
    %762 = vmatpush.msra.mxu0 0.0
    %763 = vmatpush.msra.mxu0 0.0
    %764 = vmatpush.msra.mxu0 0.0
    %765 = vmatpush.msra.mxu0 0.0
    %766 = vmatpush.msra.mxu0 0.0
    %767 = vmatpush.msra.mxu0 0.0
    %768 = vmatpush.msra.mxu0 0.0
    %769 = vmatpush.msra.mxu0 0.0
    %770 = vmatpush.msra.mxu0 0.0
    %771 = vmatpush.msra.mxu0 0.0
    %772 = vmatpush.msra.mxu0 %v79
    %773 = vmatmul.f32.gmra.mxu0 %v660
    %v774 = vpop.f32.mrf.mxu0
    %v775 = vadd.f32 0.0, %v774
    %776 = vmatmul.f32.gmra.mxu0 %v663
    %v777 = vpop.f32.mrf.mxu0
    %v778 = vadd.f32 0.0, %v777
    %779 = vdwg.mxu0
    %780 = vmatpush.msra.mxu0 0.0
    %781 = vmatpush.msra.mxu0 0.0
    %782 = vmatpush.msra.mxu0 0.0
    %783 = vmatpush.msra.mxu0 0.0
    %784 = vmatpush.msra.mxu0 0.0
    %785 = vmatpush.msra.mxu0 0.0
    %786 = vmatpush.msra.mxu0 0.0
    %787 = vmatpush.msra.mxu0 0.0
    %788 = vmatpush.msra.mxu0 0.0
    %789 = vmatpush.msra.mxu0 0.0
    %790 = vmatpush.msra.mxu0 0.0
    %791 = vmatpush.msra.mxu0 0.0
    %792 = vmatpush.msra.mxu0 0.0
    %793 = vmatpush.msra.mxu0 0.0
    %794 = vmatpush.msra.mxu0 0.0
    %795 = vmatpush.msra.mxu0 %v80
    %796 = vmatmul.f32.gmra.mxu0 %v660
    %v797 = vpop.f32.mrf.mxu0
    %v798 = vadd.f32 0.0, %v797
    %799 = vmatmul.f32.gmra.mxu0 %v663
    %v800 = vpop.f32.mrf.mxu0
    %v801 = vadd.f32 0.0, %v800
    %802 = vdwg.mxu0
    %v803 = vadd.f32 %v647, %v683
    %v804 = vadd.f32 %v648, %v706
    %v805 = vadd.f32 %v649, %v729
    %v806 = vadd.f32 %v650, %v752
    %v807 = vadd.f32 %v651, %v775
    %v808 = vadd.f32 %v652, %v798
    %v809 = vadd.f32 %v653, %v686
    %v810 = vadd.f32 %v654, %v709
    %v811 = vadd.f32 %v655, %v732
    %v812 = vadd.f32 %v656, %v755
    %v813 = vadd.f32 %v657, %v778
    %v814 = vadd.f32 %v658, %v801
    %v815 = vpack.c.bf16 %v804, %v803
    %v816 = vpack.c.bf16 %v806, %v805
    %v817 = vpack.c.bf16 %v808, %v807
    %v818 = vpack.c.bf16 %v810, %v809
    %v819 = vpack.c.bf16 %v812, %v811
    %v820 = vpack.c.bf16 %v814, %v813
    %821 = vst [vmem:[#allocation8] sm:$0xff] %v815
    %822 = vst [vmem:[#allocation8 + $0x8] sm:$0xff] %v816
    %823 = vst [vmem:[#allocation8 + $0x10] sm:$0xff] %v817
    %824 = vst [vmem:[#allocation8 + $0x18] sm:$0xff] %v818
    %825 = vst [vmem:[#allocation8 + $0x20] sm:$0xff] %v819
    %826 = vst [vmem:[#allocation8 + $0x28] sm:$0xff] %v820
    // Predicated region
    $region34: #{tpu_custom_call.1} parent=1 // pred_check
      _
    $region35: #{tpu_custom_call.1} parent=1 // pred_check_branch
      %828 = sbr.rel (0) target = $region37
    $region36: #{tpu_custom_call.1} parent=1 // pred_region
      %830 = vsyncadd [#allocation4], 0
      %s831 = sshll.u32 [#allocation8], 4
      %s832 = int_to_ptr.vmem [resolvable:$true] %s831
      %s833 = sshll.u32 %s5, 4
      %s834 = int_to_ptr.hbm [resolvable:$true] %s833
      %839 = dma.vmem_to_hbm [thread:$0]  %s832, 768, %s834, [#allocation4], 384, 384, 24
    $region37: #{tpu_custom_call.1} parent=1 // pred_fallthru
      _
    // Predicated region
    $region38: #{tpu_custom_call.1} parent=1 // pred_check
      _
    $region39: #{tpu_custom_call.1} parent=1 // pred_check_branch
      %841 = sbr.rel (0) target = $region41
    $region40: #{tpu_custom_call.1} parent=1 // pred_region
      %843 = dma.done [#allocation4], 768
    $region41: #{tpu_custom_call.1} parent=1 // pred_fallthru
      _
    %844 = vsyncpa [#allocation3], 1
    %845 = vsyncpa [#allocation6], 1
    %846 = vsyncpa [#allocation4], 1

</llo_original>
